<compile_context>
chip_gen: v6e
topology: v6e:2x2x1
jax: 0.10.0
libtpu: 0.0.40
codegen_flags: <defaults>
</compile_context>

<pallas_src>
import functools

import jax
import jax.numpy as jnp
from jax.experimental import pallas as pl
from jax.experimental.pallas import tpu as pltpu

PATCH = 8            # RAFT produces flow at 1/8 resolution
FEAT_DIM = 128       # lane-dense feature dim (fills 128-lane vregs / MXU depth)
EMBED_M_TILE = 256   # patch rows per embed grid step (multiple of 128)
SRC_TILE = 256       # source tokens per correlation grid step
TGT_TILE = 512       # target tokens streamed per correlation grid step
OUT_LANES = 128      # lane-padded flow output (lane 0 = x, lane 1 = y)
NEG_BIG = -1e30      # bias for padded target columns
VMEM_LIMIT = 32 * 1024 * 1024   # explicit scoped-VMEM budget (safe on v5e/v6e/v7x)


def _round_up(x, m):
    return ((x + m - 1) // m) * m


# ----------------------------------------------------------------------------
# Pallas kernels
# ----------------------------------------------------------------------------
def _patch_embed_kernel(p_ref, w_ref, b_ref, o_ref):
    # (tm, K) @ (K, D) on the MXU, f32 accumulation, bias add in f32.
    acc = jnp.dot(p_ref[...], w_ref[...], preferred_element_type=jnp.float32)
    o_ref[...] = (acc + b_ref[...]).astype(o_ref.dtype)


def patch_embed(patches, w, b):
    """patches: (M, K) bf16, w: (K, D) bf16, b: (1, D) f32 -> (M, D) bf16."""
    M, K = patches.shape
    D = w.shape[1]
    if M <= EMBED_M_TILE:
        tm, m_pad = M, M
    else:
        tm, m_pad = EMBED_M_TILE, _round_up(M, EMBED_M_TILE)
    if m_pad != M:
        patches = jnp.pad(patches, ((0, m_pad - M), (0, 0)))
    out = pl.pallas_call(
        _patch_embed_kernel,
        grid=(m_pad // tm,),
        in_specs=[
            pl.BlockSpec((tm, K), lambda i: (i, 0)),
            pl.BlockSpec((K, D), lambda i: (0, 0)),   # weight resident in VMEM
            pl.BlockSpec((1, D), lambda i: (0, 0)),
        ],
        out_specs=pl.BlockSpec((tm, D), lambda i: (i, 0)),
        out_shape=jax.ShapeDtypeStruct((m_pad, D), jnp.bfloat16),
        compiler_params=pltpu.CompilerParams(
            dimension_semantics=("parallel",),
            vmem_limit_bytes=VMEM_LIMIT,
        ),
    )(patches, w, b)
    return out[:M]


def _corr_flow_kernel(f1_ref, f2_ref, csrc_ref, ctgt_ref, bias_ref, o_ref,
                      m_sc, l_sc, ax_sc, ay_sc, *, scale):
    # grid = (batch, source-chunk, target-chunk); target chunk is the
    # streamed ("arbitrary") reduction axis.
    j = pl.program_id(2)

    @pl.when(j == 0)
    def _():
        m_sc[...] = jnp.full_like(m_sc, -jnp.inf)
        l_sc[...] = jnp.zeros_like(l_sc)
        ax_sc[...] = jnp.zeros_like(ax_sc)
        ay_sc[...] = jnp.zeros_like(ay_sc)

    # (S, T) correlation chunk: contraction on the last dims of both operands
    # (no f2 transpose materialized), bf16 inputs, f32 accumulation.  The full
    # (N, N) correlation volume is never formed.
    corr = jax.lax.dot_general(
        f1_ref[0], f2_ref[0], (((1,), (1,)), ((), ())),
        preferred_element_type=jnp.float32) * scale
    corr = corr + bias_ref[...]            # masks padded target columns

    cx = ctgt_ref[0:1, :]                  # (1, T) target x coords, lane-dense
    cy = ctgt_ref[1:2, :]                  # (1, T) target y coords

    m_prev = m_sc[...]                                            # (S, 1)
    m_new = jnp.maximum(m_prev, jnp.max(corr, axis=-1, keepdims=True))
    alpha = jnp.exp(m_prev - m_new)
    p = jnp.exp(corr - m_new)                                     # (S, T)
    l_sc[...] = alpha * l_sc[...] + jnp.sum(p, axis=-1, keepdims=True)
    ax_sc[...] = alpha * ax_sc[...] + jnp.sum(p * cx, axis=-1, keepdims=True)
    ay_sc[...] = alpha * ay_sc[...] + jnp.sum(p * cy, axis=-1, keepdims=True)
    m_sc[...] = m_new

    @pl.when(j == pl.num_programs(2) - 1)
    def _():
        inv_l = pl.reciprocal(l_sc[...], approx=True)             # EUP slot
        flow_x = ax_sc[...] * inv_l - csrc_ref[:, 0:1]            # (S, 1)
        flow_y = ay_sc[...] * inv_l - csrc_ref[:, 1:2]            # (S, 1)
        # Full-width (128-lane) unmasked store; lane 0 = x, lane 1 = y.
        lane = jax.lax.broadcasted_iota(
            jnp.int32, (flow_x.shape[0], OUT_LANES), 1)
        o_ref[0] = jnp.where(lane == 0, flow_x,
                             jnp.where(lane == 1, flow_y, 0.0))


def correlation_flow(f1, f2, coords_x, coords_y):
    """f1, f2: (B, N, D) bf16 features; coords: (N,) f32 -> flow (B, N, 2)."""
    B, N, D = f1.shape
    scale = 1.0 / float(D) ** 0.5

    if N <= SRC_TILE:
        ts, ns_pad = N, N
    else:
        ts, ns_pad = SRC_TILE, _round_up(N, SRC_TILE)
    if N <= TGT_TILE:
        tt, nt_pad = N, N
    else:
        tt, nt_pad = TGT_TILE, _round_up(N, TGT_TILE)

    f1p = jnp.pad(f1, ((0, 0), (0, ns_pad - N), (0, 0)))
    f2p = jnp.pad(f2, ((0, 0), (0, nt_pad - N), (0, 0)))
    csrc = jnp.pad(jnp.stack([coords_x, coords_y], axis=-1),
                   ((0, ns_pad - N), (0, 0)))                     # (ns_pad, 2)
    ctgt = jnp.pad(jnp.stack([coords_x, coords_y], axis=0),
                   ((0, 0), (0, nt_pad - N)))                     # (2, nt_pad)
    bias = jnp.pad(jnp.zeros((1, N), jnp.float32),
                   ((0, 0), (0, nt_pad - N)), constant_values=NEG_BIG)

    out = pl.pallas_call(
        functools.partial(_corr_flow_kernel, scale=scale),
        grid=(B, ns_pad // ts, nt_pad // tt),
        in_specs=[
            pl.BlockSpec((1, ts, D), lambda b, i, j: (b, i, 0)),   # f1 chunk
            pl.BlockSpec((1, tt, D), lambda b, i, j: (b, j, 0)),   # f2 stream
            pl.BlockSpec((ts, 2), lambda b, i, j: (i, 0)),         # src coords
            pl.BlockSpec((2, tt), lambda b, i, j: (0, j)),         # tgt coords
            pl.BlockSpec((1, tt), lambda b, i, j: (0, j)),         # tgt mask
        ],
        out_specs=pl.BlockSpec((1, ts, OUT_LANES), lambda b, i, j: (b, i, 0)),
        out_shape=jax.ShapeDtypeStruct((B, ns_pad, OUT_LANES), jnp.float32),
        scratch_shapes=[pltpu.VMEM((ts, 1), jnp.float32)] * 4,
        compiler_params=pltpu.CompilerParams(
            dimension_semantics=("parallel", "parallel", "arbitrary"),
            vmem_limit_bytes=VMEM_LIMIT,
        ),
    )(f1p, f2p, csrc, ctgt, bias)
    return out[:, :N, :2]


# ----------------------------------------------------------------------------
# Glue (plain JAX): im2col, coords, upsampling, resize_flow
# ----------------------------------------------------------------------------
def extract_patches(x):
    # x: (B, C, H, W) -> (B*N, C*PATCH*PATCH), non-overlapping 8x8 patches
    B, C, H, W = x.shape
    hc, wc = H // PATCH, W // PATCH
    x = x.reshape(B, C, hc, PATCH, wc, PATCH)
    x = x.transpose(0, 2, 4, 1, 3, 5)        # (B, hc, wc, C, ph, pw)
    return x.reshape(B * hc * wc, C * PATCH * PATCH)


def make_coords(hc, wc):
    ys, xs = jnp.meshgrid(
        jnp.arange(hc, dtype=jnp.float32),
        jnp.arange(wc, dtype=jnp.float32),
        indexing="ij",
    )
    return xs.reshape(-1), ys.reshape(-1)    # (N,), (N,)


def resize_flow(flow, size):
    # Same semantics as the PyTorch resize_flow helper (bilinear, half-pixel).
    H, W = size
    B, _, h, w = flow.shape
    scale = jnp.array([W / w, H / h], dtype=flow.dtype).reshape(1, 2, 1, 1)
    flow = flow * scale
    return jax.image.resize(flow, (B, 2, H, W), method="bilinear")


def init_params(key, in_ch=3):
    kw, _ = jax.random.split(key)
    w = 0.02 * jax.random.normal(
        kw, (in_ch * PATCH * PATCH, FEAT_DIM), jnp.float32
    )
    b = jnp.zeros((1, FEAT_DIM), jnp.float32)
    return {"w_embed": w, "b_embed": b}


def raft_flow_forward(params, img1, img2, img_size=None):
    """RAFTFlow.forward: img1, img2 NCHW in [0,1] -> flow (B, 2, H, W)."""
    original_size = img1.shape[2:]
    if img_size is not None:
        B, C = img1.shape[:2]
        tgt = (B, C) + tuple(img_size)
        img1 = jax.image.resize(img1, tgt, method="bilinear")
        img2 = jax.image.resize(img2, tgt, method="bilinear")

    B, C, H, W = img1.shape
    hc, wc = H // PATCH, W // PATCH
    N = hc * wc

    # model_transform ([0,1] -> [-1,1]) folded into the embed weights:
    # (2p - 1) @ W + b == p @ (2W) + (b - 1^T W)  -> no normalization pass.
    w = params["w_embed"]
    w_eff = (2.0 * w).astype(jnp.bfloat16)
    b_eff = params["b_embed"] - jnp.sum(w, axis=0, keepdims=True)

    # single fused embed call for both images: weight DMA'd once, longer M dim
    patches = jnp.concatenate(
        [extract_patches(img1), extract_patches(img2)], axis=0
    ).astype(jnp.bfloat16)                               # (2*B*N, C*P*P)
    feats = patch_embed(patches, w_eff, b_eff)           # (2*B*N, D) bf16
    f1 = feats[: B * N].reshape(B, N, FEAT_DIM)
    f2 = feats[B * N:].reshape(B, N, FEAT_DIM)

    # streaming all-pairs correlation + soft-argmax flow (1/8-res units)
    cx, cy = make_coords(hc, wc)
    flow_lr = correlation_flow(f1, f2, cx, cy)           # (B, N, 2)
    flow_lr = flow_lr.reshape(B, hc, wc, 2).transpose(0, 3, 1, 2)

    # upsample x8 to input resolution and convert displacement to full-res px
    flow = jax.image.resize(flow_lr, (B, 2, H, W), method="bilinear") * float(PATCH)

    if img_size is not None:
        flow = resize_flow(flow, original_size)
    return flow


if __name__ == "__main__":
    key = jax.random.PRNGKey(0)
    k1, k2, k3 = jax.random.split(key, 3)

    B, C, H, W = 2, 3, 32, 32
    img1 = jax.random.uniform(k1, (B, C, H, W), jnp.float32)
    img2 = jax.random.uniform(k2, (B, C, H, W), jnp.float32)
    params = init_params(k3, in_ch=C)

    flow = raft_flow_forward(params, img1, img2, img_size=None)
    flow = jax.block_until_ready(flow)

    assert flow.shape == (B, 2, H, W), flow.shape
    assert flow.dtype == jnp.float32
    assert bool(jnp.all(jnp.isfinite(flow)))
    print("KERNEL_OK")
</pallas_src>

<mosaic_0001>
module attributes {stable_mosaic.version = 11 : i64} {
  func.func @_patch_embed_kernel(%arg0: i32, %arg1: memref<64x192xbf16, #tpu.memory_space<vmem>>, %arg2: memref<192x128xbf16, #tpu.memory_space<vmem>>, %arg3: memref<1x128xf32, #tpu.memory_space<vmem>>, %arg4: memref<64x128xbf16, #tpu.memory_space<vmem>>) attributes {dimension_semantics = [#tpu.dimension_semantics<parallel>], iteration_bounds = array<i64: 1>, scalar_prefetch = 0 : i64, scratch_operands = 0 : i64, tpu.core_type = #tpu.core_type<tc>, window_params = [{transform_indices = @transform_0, window_bounds = array<i64: 64, 192>}, {pipeline_mode = #tpu.pipeline_mode<synchronous>, transform_indices = @transform_1, window_bounds = array<i64: 192, 128>}, {pipeline_mode = #tpu.pipeline_mode<synchronous>, transform_indices = @transform_2, window_bounds = array<i64: 1, 128>}, {transform_indices = @transform_3, window_bounds = array<i64: 64, 128>}]} {
    %c0 = arith.constant 0 : index
    %c0_0 = arith.constant 0 : index
    %0 = vector.load %arg1[%c0, %c0_0] : memref<64x192xbf16, #tpu.memory_space<vmem>>, vector<64x192xbf16>
    %c0_1 = arith.constant 0 : index
    %c0_2 = arith.constant 0 : index
    %1 = vector.load %arg2[%c0_1, %c0_2] : memref<192x128xbf16, #tpu.memory_space<vmem>>, vector<192x128xbf16>
    %cst = arith.constant dense<0.000000e+00> : vector<64x128xf32>
    %2 = tpu.matmul %0, %1, %cst {dimension_numbers = #tpu.dot_dimension_numbers<[1], [0], [0], [1], [0, 0, 1, 1], [], []>} : vector<64x192xbf16>, vector<192x128xbf16>, vector<64x128xf32> -> vector<64x128xf32>
    %c0_3 = arith.constant 0 : index
    %c0_4 = arith.constant 0 : index
    %3 = vector.load %arg3[%c0_3, %c0_4] : memref<1x128xf32, #tpu.memory_space<vmem>>, vector<1x128xf32>
    %4 = vector.broadcast %3 : vector<1x128xf32> to vector<64x128xf32>
    %5 = arith.addf %2, %4 : vector<64x128xf32>
    %6 = arith.truncf %5 : vector<64x128xf32> to vector<64x128xbf16>
    %c0_5 = arith.constant 0 : index
    %c0_6 = arith.constant 0 : index
    %7 = vector.load %arg4[%c0_5, %c0_6] : memref<64x128xbf16, #tpu.memory_space<vmem>>, vector<64x128xbf16>
    tpu.vector_store %arg4[%c0_5, %c0_6], %6 {strides = array<i32>} : memref<64x128xbf16, #tpu.memory_space<vmem>>, vector<64x128xbf16>,
    return
  }
  func.func @transform_0(%arg0: i32) -> (i32, i32) {
    %c0_i32 = arith.constant 0 : i32
    %c0_i32_0 = arith.constant 0 : i32
    return %arg0, %c0_i32 : i32, i32
  }
  func.func @transform_1(%arg0: i32) -> (i32, i32) {
    %c0_i32 = arith.constant 0 : i32
    %c0_i32_0 = arith.constant 0 : i32
    %c0_i32_1 = arith.constant 0 : i32
    return %c0_i32, %c0_i32_0 : i32, i32
  }
  func.func @transform_2(%arg0: i32) -> (i32, i32) {
    %c0_i32 = arith.constant 0 : i32
    %c0_i32_0 = arith.constant 0 : i32
    %c0_i32_1 = arith.constant 0 : i32
    return %c0_i32, %c0_i32_0 : i32, i32
  }
  func.func @transform_3(%arg0: i32) -> (i32, i32) {
    %c0_i32 = arith.constant 0 : i32
    %c0_i32_0 = arith.constant 0 : i32
    return %arg0, %c0_i32 : i32, i32
  }
}

</mosaic_0001>

<llo_original>
// kernel: tpu_custom_call.1
$region0: #{tpu_custom_call.1}
  #allocation0 [shape = 'u32[]', space=smem, size = 0x4, offset = 0x4, fixed_abs, tag = 'smem constant byte address 0x4 - core index']
  #allocation1 [shape = 'u32[144,128]{1,0:T(1,128)}', space=vmem, size = 0x12000, scoped, tag = 'internal scratch']
  %s0 = inlined_call_operand.hbm [shape: bf16[64,192], index: 0, kind: input, shape index: {}]
  %s1 = inlined_call_operand.hbm [shape: bf16[192,128], index: 1, kind: input, shape index: {}]
  %s2 = inlined_call_operand.vmem [shape: f32[1,128], index: 2, kind: input, shape index: {}]
  %s3 = inlined_call_operand.hbm [shape: bf16[64,128], index: 3, kind: output, shape index: {}]
  %s4 = sld [smem:[#allocation0]]
  $region30: #{tpu_custom_call.1} parent=0
    _
  %s6 = ssub.s32 1, %s4
  %s7 = scalar_select 0, %s6, %s4
  $region1: #{tpu_custom_call.1} parent=0
    #allocation2 [shape = 'u8[32768]{0}', space=vmem, size = 0x8000, scoped, tag = 'input window, operand 0, single buffered']
    #allocation3 [shape = 's32[1]{0}', space=sflag, size = 0x4, scoped, tag = 'scoped memory for tpu_custom_call.1']
    #allocation4 [shape = 's32[1]{0}', space=sflag, size = 0x4, scoped, tag = 'scoped memory for tpu_custom_call.1']
    #allocation5 [shape = 'u8[49152]{0}', space=vmem, size = 0xc000, scoped, tag = 'input window, operand 1, single buffered']
    #allocation6 [shape = 's32[1]{0}', space=sflag, size = 0x4, scoped, tag = 'scoped memory for tpu_custom_call.1']
    #allocation7 [shape = 'u8[16384]{0}', space=vmem, size = 0x4000, scoped, tag = 'output window, operand 0, single buffered']
    %8 = vsyncpa [#allocation3], 0
    %9 = vsyncpa [#allocation6], 0
    %10 = vsyncpa [#allocation4], 0
    // Predicated region
    $region2: #{tpu_custom_call.1} parent=1 // pred_check
      _
    $region3: #{tpu_custom_call.1} parent=1 // pred_check_branch
      %12 = sbr.rel (0) target = $region5
    $region4: #{tpu_custom_call.1} parent=1 // pred_region
      %s14 = ssub.s32 1024, 1024
      %15 = vsyncadd [#allocation3], %s14
      %s16 = sshll.u32 [#allocation2], 4
      %s17 = int_to_ptr.vmem [resolvable:$true] %s16
      %22 = dma.hbm_to_vmem [thread:$0]  %s0, 1024, %s17, [#allocation3], 128, 128, 8
    $region5: #{tpu_custom_call.1} parent=1 // pred_fallthru
      _
    // Predicated region
    $region6: #{tpu_custom_call.1} parent=1 // pred_check
      _
    $region7: #{tpu_custom_call.1} parent=1 // pred_check_branch
      %24 = sbr.rel (0) target = $region9
    $region8: #{tpu_custom_call.1} parent=1 // pred_region
      %s26 = ssub.s32 1536, 1536
      %27 = vsyncadd [#allocation6], %s26
      %s28 = sshll.u32 [#allocation5], 4
      %s29 = int_to_ptr.vmem [resolvable:$true] %s28
      %34 = dma.hbm_to_vmem [thread:$0]  %s1, 1536, %s29, [#allocation6], 64, 64, 4
    $region9: #{tpu_custom_call.1} parent=1 // pred_fallthru
      _
    // Predicated region
    $region10: #{tpu_custom_call.1} parent=1 // pred_check
      _
    $region11: #{tpu_custom_call.1} parent=1 // pred_check_branch
      %36 = sbr.rel (0) target = $region13
    $region12: #{tpu_custom_call.1} parent=1 // pred_region
      _
    $region13: #{tpu_custom_call.1} parent=1 // pred_fallthru
      _
    // Predicated region
    $region14: #{tpu_custom_call.1} parent=1 // pred_check
      _
    $region15: #{tpu_custom_call.1} parent=1 // pred_check_branch
      %38 = sbr.rel (0) target = $region17
    $region16: #{tpu_custom_call.1} parent=1 // pred_region
      %39 = dma.done [#allocation3], 1024
    $region17: #{tpu_custom_call.1} parent=1 // pred_fallthru
      _
    // Predicated region
    $region18: #{tpu_custom_call.1} parent=1 // pred_check
      _
    $region19: #{tpu_custom_call.1} parent=1 // pred_check_branch
      %41 = sbr.rel (0) target = $region21
    $region20: #{tpu_custom_call.1} parent=1 // pred_region
      %42 = dma.done [#allocation6], 1536
    $region21: #{tpu_custom_call.1} parent=1 // pred_fallthru
      _
    %v44 = vld [vmem:[#allocation2] sm:$0xff]
    %v45 = vld [vmem:[#allocation2 + $0x8] sm:$0xff]
    %v46 = vld [vmem:[#allocation2 + $0x10] sm:$0xff]
    %v47 = vld [vmem:[#allocation2 + $0x18] sm:$0xff]
    %v48 = vld [vmem:[#allocation2 + $0x20] sm:$0xff]
    %v49 = vld [vmem:[#allocation2 + $0x28] sm:$0xff]
    %v50 = vld [vmem:[#allocation2 + $0x30] sm:$0xff]
    %v51 = vld [vmem:[#allocation2 + $0x38] sm:$0xff]
    %v52 = vld [vmem:[#allocation5] sm:$0xf]
    %v53 = vld [vmem:[#allocation5 + $0x4] sm:$0xf]
    %v54 = vld [vmem:[#allocation5 + $0x8] sm:$0xf]
    %v55 = vld [vmem:[#allocation5 + $0xc] sm:$0xf]
    %v56 = vld [vmem:[#allocation5 + $0x10] sm:$0xf]
    %v57 = vld [vmem:[#allocation5 + $0x14] sm:$0xf]
    %v58 = vld [vmem:[#allocation5 + $0x18] sm:$0xf]
    %v59 = vld [vmem:[#allocation5 + $0x1c] sm:$0xf]
    %v60 = vld [vmem:[#allocation5 + $0x20] sm:$0xf]
    %v61 = vld [vmem:[#allocation5 + $0x24] sm:$0xf]
    %v62 = vld [vmem:[#allocation5 + $0x28] sm:$0xf]
    %v63 = vld [vmem:[#allocation5 + $0x2c] sm:$0xf]
    %v64 = vld [vmem:[#allocation5 + $0x30] sm:$0xf]
    %v65 = vld [vmem:[#allocation5 + $0x34] sm:$0xf]
    %v66 = vld [vmem:[#allocation5 + $0x38] sm:$0xf]
    %v67 = vld [vmem:[#allocation5 + $0x3c] sm:$0xf]
    %v68 = vld [vmem:[#allocation5 + $0x40] sm:$0xf]
    %v69 = vld [vmem:[#allocation5 + $0x44] sm:$0xf]
    %v70 = vld [vmem:[#allocation5 + $0x48] sm:$0xf]
    %v71 = vld [vmem:[#allocation5 + $0x4c] sm:$0xf]
    %v72 = vld [vmem:[#allocation5 + $0x50] sm:$0xf]
    %v73 = vld [vmem:[#allocation5 + $0x54] sm:$0xf]
    %v74 = vld [vmem:[#allocation5 + $0x58] sm:$0xf]
    %v75 = vld [vmem:[#allocation5 + $0x5c] sm:$0xf]
    %v76 = vld [vmem:[%s2] sm:$0x1]
    %v78 = vlaneseq
    %v79 = vshrl.u32 %v78, 7
    %v80 = vsub.s32 0, %v79
    %v81 = vrot.slane %v76, %v80
    %v91 = vunpack.c.l.b16 %v44
    %v92 = vunpack.c.h.b16 %v44
    %v93 = vunpack.c.l.b16 %v45
    %v94 = vunpack.c.h.b16 %v45
    %v95 = vunpack.c.l.b16 %v46
    %v96 = vunpack.c.h.b16 %v46
    %v97 = vunpack.c.l.b16 %v47
    %v98 = vunpack.c.h.b16 %v47
    %v99 = vunpack.c.l.b16 %v48
    %v100 = vunpack.c.h.b16 %v48
    %v101 = vunpack.c.l.b16 %v49
    %v102 = vunpack.c.h.b16 %v49
    %v103 = vunpack.c.l.b16 %v50
    %v104 = vunpack.c.h.b16 %v50
    %v105 = vunpack.c.l.b16 %v51
    %v106 = vunpack.c.h.b16 %v51
    %v107 = vpack.c.b16 %v93, %v91
    %v108 = vpack.c.b16 %v94, %v92
    %v109 = vpack.c.b16 %v97, %v95
    %v110 = vpack.c.b16 %v98, %v96
    %v111 = vpack.c.b16 %v101, %v99
    %v112 = vpack.c.b16 %v102, %v100
    %v113 = vpack.c.b16 %v105, %v103
    %v114 = vpack.c.b16 %v106, %v104
    %v143 = vunpack.c.l.b16 %v52
    %v144 = vunpack.c.l.b16 %v53
    %v145 = vunpack.c.l.b16 %v54
    %v146 = vunpack.c.l.b16 %v55
    %v147 = vunpack.c.l.b16 %v56
    %v148 = vunpack.c.l.b16 %v57
    %v149 = vunpack.c.l.b16 %v58
    %v150 = vunpack.c.l.b16 %v59
    %v151 = vunpack.c.l.b16 %v60
    %v152 = vunpack.c.l.b16 %v61
    %v153 = vunpack.c.l.b16 %v62
    %v154 = vunpack.c.l.b16 %v63
    %v155 = vunpack.c.l.b16 %v64
    %v156 = vunpack.c.l.b16 %v65
    %v157 = vunpack.c.l.b16 %v66
    %v158 = vunpack.c.l.b16 %v67
    %v159 = vunpack.c.l.b16 %v68
    %v160 = vunpack.c.l.b16 %v69
    %v161 = vunpack.c.l.b16 %v70
    %v162 = vunpack.c.l.b16 %v71
    %v163 = vunpack.c.l.b16 %v72
    %v164 = vunpack.c.l.b16 %v73
    %v165 = vunpack.c.l.b16 %v74
    %v166 = vunpack.c.l.b16 %v75
    %v167 = vpack.c.b16 %v144, %v143
    %v168 = vpack.c.b16 %v146, %v145
    %v169 = vpack.c.b16 %v148, %v147
    %v170 = vpack.c.b16 %v150, %v149
    %v171 = vpack.c.b16 %v152, %v151
    %v172 = vpack.c.b16 %v154, %v153
    %v173 = vpack.c.b16 %v156, %v155
    %v174 = vpack.c.b16 %v158, %v157
    %v175 = vpack.c.b16 %v160, %v159
    %v176 = vpack.c.b16 %v162, %v161
    %v177 = vpack.c.b16 %v164, %v163
    %v178 = vpack.c.b16 %v166, %v165
    %vm191 = vcmask 523264
    %v193 = vsel %vm191, %v108, 0
    %v196 = vsel %vm191, %v110, 0
    %v199 = vsel %vm191, %v112, 0
    %v202 = vsel %vm191, %v114, 0
    %204 = vmatprep.subr.bf16.mxu0 0
    %205 = vmatpush1.bf16.msra.mxu0 %v174
    %206 = vmatprep.subr.bf16.mxu0 0
    %207 = vmatpush1.bf16.msra.mxu0 %v173
    %208 = vmatprep.subr.bf16.mxu0 0
    %209 = vmatpush1.bf16.msra.mxu0 %v172
    %210 = vmatprep.subr.bf16.mxu0 0
    %211 = vmatpush1.bf16.msra.mxu0 %v171
    %212 = vmatprep.subr.bf16.mxu0 0
    %213 = vmatpush1.bf16.msra.mxu0 %v170
    %214 = vmatprep.subr.bf16.mxu0 0
    %215 = vmatpush1.bf16.msra.mxu0 %v169
    %216 = vmatprep.subr.bf16.mxu0 0
    %217 = vmatpush1.bf16.msra.mxu0 %v168
    %218 = vmatprep.subr.bf16.mxu0 0
    %219 = vmatpush1.bf16.msra.mxu0 %v167
    %220 = vmatprep.subr.bf16.mxu0 0
    %221 = vmatpush2.bf16.msra.mxu0 0
    %222 = vmatprep.subr.bf16.mxu0 0
    %223 = vmatpush2.bf16.msra.mxu0 0
    %224 = vmatprep.subr.bf16.mxu0 0
    %225 = vmatpush2.bf16.msra.mxu0 0
    %226 = vmatprep.subr.bf16.mxu0 0
    %227 = vmatpush2.bf16.msra.mxu0 0
    %228 = vmatprep.subr.bf16.mxu0 0
    %229 = vmatpush2.bf16.msra.mxu0 %v178
    %230 = vmatprep.subr.bf16.mxu0 0
    %231 = vmatpush2.bf16.msra.mxu0 %v177
    %232 = vmatprep.subr.bf16.mxu0 0
    %233 = vmatpush2.bf16.msra.mxu0 %v176
    %234 = vmatprep.subr.bf16.mxu0 0
    %235 = vmatpush2.bf16.msra.mxu0 %v175
    %236 = vmatprep.mubr.bf16.mxu0 %v193
    %237 = vmatmul.mubr.bf16.gmra.mxu0 %v107
    %v238 = vpop.f32.mrf.mxu0
    %v239 = vadd.f32 %v81, %v238
    %v240 = vpop.f32.mrf.mxu0
    %v241 = vpop.f32.mrf.mxu0
    %v242 = vadd.f32 %v81, %v241
    %v243 = vpop.f32.mrf.mxu0
    %244 = vmatprep.mubr.bf16.mxu0 %v196
    %245 = vmatmul.mubr.bf16.gmra.mxu0 %v109
    %v246 = vpop.f32.mrf.mxu0
    %v247 = vadd.f32 %v81, %v246
    %v248 = vpop.f32.mrf.mxu0
    %v249 = vpop.f32.mrf.mxu0
    %v250 = vadd.f32 %v81, %v249
    %v251 = vpop.f32.mrf.mxu0
    %252 = vmatprep.mubr.bf16.mxu0 %v199
    %253 = vmatmul.mubr.bf16.gmra.mxu0 %v111
    %v254 = vpop.f32.mrf.mxu0
    %v255 = vadd.f32 %v81, %v254
    %v256 = vpop.f32.mrf.mxu0
    %v257 = vpop.f32.mrf.mxu0
    %v258 = vadd.f32 %v81, %v257
    %v259 = vpop.f32.mrf.mxu0
    %260 = vmatprep.mubr.bf16.mxu0 %v202
    %261 = vmatmul.mubr.bf16.gmra.mxu0 %v113
    %v262 = vpop.f32.mrf.mxu0
    %v263 = vadd.f32 %v81, %v262
    %v264 = vpop.f32.mrf.mxu0
    %v265 = vpop.f32.mrf.mxu0
    %v266 = vadd.f32 %v81, %v265
    %v267 = vpop.f32.mrf.mxu0
    %268 = vdwg.mxu0
    %v269 = vpack.c.bf16 %v242, %v239
    %v270 = vpack.c.bf16 %v250, %v247
    %v271 = vpack.c.bf16 %v258, %v255
    %v272 = vpack.c.bf16 %v266, %v263
    %v277 = vunpack.c.l.b16 %v269
    %v278 = vunpack.c.h.b16 %v269
    %v279 = vunpack.c.l.b16 %v270
    %v280 = vunpack.c.h.b16 %v270
    %v281 = vunpack.c.l.b16 %v271
    %v282 = vunpack.c.h.b16 %v271
    %v283 = vunpack.c.l.b16 %v272
    %v284 = vunpack.c.h.b16 %v272
    %v285 = vpack.c.b16 %v277, %v277
    %v286 = vpack.c.b16 %v278, %v278
    %v287 = vpack.c.b16 %v279, %v279
    %v288 = vpack.c.b16 %v280, %v280
    %v289 = vpack.c.b16 %v281, %v281
    %v290 = vpack.c.b16 %v282, %v282
    %v291 = vpack.c.b16 %v283, %v283
    %v292 = vpack.c.b16 %v284, %v284
    %301 = vst [vmem:[#allocation7] sm:$0xf] %v285
    %302 = vst [vmem:[#allocation7 + $0x4] sm:$0xf] %v286
    %303 = vst [vmem:[#allocation7 + $0x8] sm:$0xf] %v287
    %304 = vst [vmem:[#allocation7 + $0xc] sm:$0xf] %v288
    %305 = vst [vmem:[#allocation7 + $0x10] sm:$0xf] %v289
    %306 = vst [vmem:[#allocation7 + $0x14] sm:$0xf] %v290
    %307 = vst [vmem:[#allocation7 + $0x18] sm:$0xf] %v291
    %308 = vst [vmem:[#allocation7 + $0x1c] sm:$0xf] %v292
    // Predicated region
    $region22: #{tpu_custom_call.1} parent=1 // pred_check
      _
    $region23: #{tpu_custom_call.1} parent=1 // pred_check_branch
      %310 = sbr.rel (0) target = $region25
    $region24: #{tpu_custom_call.1} parent=1 // pred_region
      %s312 = ssub.s32 512, 512
      %313 = vsyncadd [#allocation4], %s312
      %s314 = sshll.u32 [#allocation7], 4
      %s315 = int_to_ptr.vmem [resolvable:$true] %s314
      %320 = dma.vmem_to_hbm [thread:$0]  %s315, 512, %s3, [#allocation4], 64, 64, 4
    $region25: #{tpu_custom_call.1} parent=1 // pred_fallthru
      _
    // Predicated region
    $region26: #{tpu_custom_call.1} parent=1 // pred_check
      _
    $region27: #{tpu_custom_call.1} parent=1 // pred_check_branch
      %322 = sbr.rel (0) target = $region29
    $region28: #{tpu_custom_call.1} parent=1 // pred_region
      %323 = dma.done [#allocation4], 512
    $region29: #{tpu_custom_call.1} parent=1 // pred_fallthru
      _
    %324 = vsyncpa [#allocation3], 1
    %325 = vsyncpa [#allocation6], 1
    %326 = vsyncpa [#allocation4], 1

</llo_original>
